<compile_context>
chip_gen: v7x
topology: tpu7x:2x2x1
jax: 0.10.0
libtpu: 0.0.40
codegen_flags: <defaults>
</compile_context>

<pallas_src>
import functools

import jax
import jax.numpy as jnp
from jax.experimental import pallas as pl
from jax.experimental.pallas import tpu as pltpu

LANES = 128                 # vreg lane width
BLOCK_ROWS = 4096           # 4096 * 128 * 4 B = 2 MiB per input block
PALLAS_MIN_ELEMS = 8192     # below this, plain fused XLA beats kernel overhead
                            # (production value ~25k-128k elems == 100-500 KiB)


def _sse_kernel(p_ref, t_ref, o_ref, acc_ref, *, total_rows, block_rows):
    """Accumulate sum((p - t)^2) over all valid rows of the (R, 128) view."""
    i = pl.program_id(0)

    @pl.when(i == 0)
    def _():
        acc_ref[...] = jnp.zeros_like(acc_ref)

    # Mask rows past the logical end of the tensor (partial last block).
    # Zero-padded tail elements inside the last valid row already contribute 0.
    row_ids = i * block_rows + jax.lax.broadcasted_iota(
        jnp.int32, (block_rows, LANES), 0)
    valid = row_ids < total_rows

    d = p_ref[...].astype(jnp.float32) - t_ref[...].astype(jnp.float32)
    d = jnp.where(valid, d, 0.0)
    # Block-shaped accumulator: pure VPU work per step, no cross-lane traffic.
    acc_ref[...] = acc_ref[...] + d * d

    @pl.when(i == pl.num_programs(0) - 1)
    def _():
        o_ref[...] = jnp.sum(acc_ref[...]).reshape(1, 1)


def _flatten_lane_major(x):
    """Flatten to 1-D and view as (R, 128).

    Size a multiple of 128 -> free reshape (no extra HBM traffic).  Only a
    ragged tail forces a minimal padded copy.
    """
    flat = jnp.asarray(x).reshape(-1)
    n = flat.shape[0]
    rows = -(-n // LANES)
    pad = rows * LANES - n
    if pad:
        # TODO(synk): a fully copy-free ragged tail would need a manual DMA
        # from an ANY-space ref; XLA materializes this padded copy instead.
        flat = jnp.pad(flat, (0, pad))
    return flat.reshape(rows, LANES), n, rows


def mse_loss_pallas(p, t, *, block_rows=BLOCK_ROWS):
    """mean((p - t)**2) with the reduction done in a Pallas kernel."""
    p2, n, rows = _flatten_lane_major(p)
    t2, _, _ = _flatten_lane_major(t)

    br = min(block_rows, rows)        # whole-array block for smaller inputs
    grid = pl.cdiv(rows, br)
    itemsize = jnp.dtype(jnp.asarray(p).dtype).itemsize

    kernel = functools.partial(_sse_kernel, total_rows=rows, block_rows=br)

    sse = pl.pallas_call(
        kernel,
        out_shape=jax.ShapeDtypeStruct((1, 1), jnp.float32),
        grid_spec=pltpu.PrefetchScalarGridSpec(
            num_scalar_prefetch=0,
            grid=(grid,),
            in_specs=[
                pl.BlockSpec((br, LANES), lambda i: (i, 0)),
                pl.BlockSpec((br, LANES), lambda i: (i, 0)),
            ],
            out_specs=pl.BlockSpec((1, 1), lambda i: (0, 0)),
            scratch_shapes=[pltpu.VMEM((br, LANES), jnp.float32)],
        ),
        compiler_params=pltpu.CompilerParams(
            dimension_semantics=("arbitrary",)),
        cost_estimate=pl.CostEstimate(
            flops=3 * n, transcendentals=0,
            bytes_accessed=2 * n * itemsize + 4),
    )(p2, t2)

    return sse[0, 0] / jnp.float32(n)


def mse_loss(p, t):
    """Dispatch: tiny tensors -> fused XLA; large tensors -> Pallas kernel."""
    n = int(jnp.asarray(p).size)
    if n < PALLAS_MIN_ELEMS:
        pf = jnp.asarray(p, jnp.float32)
        tf = jnp.asarray(t, jnp.float32)
        return jnp.mean((pf - tf) ** 2)
    return mse_loss_pallas(p, t)


class RegressorLoss:
    """JAX/Pallas mirror of the PyTorch RegressorLoss module."""

    def __init__(self, weights=None):
        if weights is not None:
            # nn.ParameterDict of non-trainable scalars -> plain f32 scalars.
            self.weights = {k: jnp.asarray(v, dtype=jnp.float32)
                            for k, v in weights.items()}
        else:
            self.weights = None

    def compute_loss(self, p, t):
        # TODO(synk): base class leaves compute_loss abstract (raises
        # NotImplementedError); MSE is used as the concrete per-key loss here.
        return mse_loss(p, t)

    def compute_losses(self, predicted, targets):
        loss, losses = None, {}
        for key in predicted:
            p, t = predicted[key], targets[key]
            loss_key = self.compute_loss(p, t)
            losses[key] = loss_key          # unweighted, matching the spec
            if self.weights is not None and key in self.weights:
                loss_key = loss_key * self.weights[key]
            loss = loss_key if loss is None else loss + loss_key
        return loss, losses

    def __call__(self, predicted, targets):
        # TODO(synk): the PyTorch forward calls regressor.forward(batch) and
        # gathers targets via getattr(batch, key); here the predicted/target
        # dicts are supplied directly (no AtomisticModel available).
        return self.compute_losses(predicted, targets)


if __name__ == "__main__":
    key = jax.random.PRNGKey(0)
    keys = jax.random.split(key, 8)

    B, N = 2, 2048  # batch of 2 structures, 2048 atoms each
    predicted = {
        "energy": jax.random.normal(keys[0], (B, 1), dtype=jnp.float32),
        "forces": jax.random.normal(keys[1], (B, N, 3), dtype=jnp.float32),
        "stress": jax.random.normal(keys[2], (B, 3, 3), dtype=jnp.float32),
    }
    targets = {
        "energy": jax.random.normal(keys[3], (B, 1), dtype=jnp.float32),
        "forces": jax.random.normal(keys[4], (B, N, 3), dtype=jnp.float32),
        "stress": jax.random.normal(keys[5], (B, 3, 3), dtype=jnp.float32),
    }

    # deterministic loss weights (mirrors the weights dict in __init__)
    loss_fn = RegressorLoss(weights={"energy": 1.0, "forces": 100.0})

    total_loss, losses = loss_fn(predicted, targets)
    total_loss = jax.block_until_ready(total_loss)
    losses = jax.block_until_ready(losses)

    # sanity check against a pure-JAX reference of the same semantics
    ref_losses = {k: jnp.mean((predicted[k] - targets[k]) ** 2)
                  for k in predicted}
    ref_total = (ref_losses["energy"] * 1.0
                 + ref_losses["forces"] * 100.0
                 + ref_losses["stress"])
    for k in predicted:
        assert jnp.allclose(losses[k], ref_losses[k], rtol=1e-4, atol=1e-6), k
    assert jnp.allclose(total_loss, ref_total, rtol=1e-4, atol=1e-6)

    # extra check: multi-step grid + ragged (non-multiple-of-128) tail masking
    x = jax.random.normal(keys[6], (40000,), dtype=jnp.float32)
    y = jax.random.normal(keys[7], (40000,), dtype=jnp.float32)
    got = jax.block_until_ready(mse_loss_pallas(x, y, block_rows=128))
    ref = jnp.mean((x - y) ** 2)
    assert jnp.allclose(got, ref, rtol=1e-4, atol=1e-6)

    print("KERNEL_OK")
</pallas_src>

<mosaic_0001>
module attributes {stable_mosaic.version = 11 : i64} {
  func.func @_sse_kernel(%arg0: i32, %arg1: memref<96x128xf32, #tpu.memory_space<vmem>>, %arg2: memref<96x128xf32, #tpu.memory_space<vmem>>, %arg3: memref<1x1xf32, #tpu.memory_space<vmem>>, %arg4: memref<96x128xf32, #tpu.memory_space<vmem>>) attributes {dimension_semantics = [#tpu.dimension_semantics<arbitrary>], iteration_bounds = array<i64: 1>, scalar_prefetch = 0 : i64, scratch_operands = 1 : i64, tpu.core_type = #tpu.core_type<tc>, window_params = [{transform_indices = @transform_0, window_bounds = array<i64: 96, 128>}, {transform_indices = @transform_1, window_bounds = array<i64: 96, 128>}, {pipeline_mode = #tpu.pipeline_mode<synchronous>, transform_indices = @transform_2, window_bounds = array<i64: 1, 1>}]} {
    %c0_i32 = arith.constant 0 : i32
    %0 = arith.cmpi eq, %arg0, %c0_i32 : i32
    %1 = arith.extui %0 : i1 to i32
    %c0_i32_0 = arith.constant 0 : i32
    %2 = arith.cmpi ne, %1, %c0_i32_0 : i32
    scf.if %2 {
      %cst_11 = arith.constant 0.000000e+00 : f32
      %21 = vector.broadcast %cst_11 : f32 to vector<96x128xf32>
      %c0_12 = arith.constant 0 : index
      %c0_13 = arith.constant 0 : index
      %22 = vector.load %arg4[%c0_12, %c0_13] : memref<96x128xf32, #tpu.memory_space<vmem>>, vector<96x128xf32>
      tpu.vector_store %arg4[%c0_12, %c0_13], %21 {strides = array<i32>} : memref<96x128xf32, #tpu.memory_space<vmem>>, vector<96x128xf32>,
    } else {
    }
    %c96_i32 = arith.constant 96 : i32
    %3 = arith.muli %arg0, %c96_i32 : i32
    %4 = tpu.iota {dimensions = array<i32: 0>} : vector<96x128xi32>
    %5 = vector.broadcast %3 : i32 to vector<96x128xi32>
    %6 = arith.addi %5, %4 : vector<96x128xi32>
    %c96_i32_1 = arith.constant 96 : i32
    %7 = vector.broadcast %c96_i32_1 : i32 to vector<96x128xi32>
    %8 = arith.cmpi slt, %6, %7 : vector<96x128xi32>
    %c0 = arith.constant 0 : index
    %c0_2 = arith.constant 0 : index
    %9 = vector.load %arg1[%c0, %c0_2] : memref<96x128xf32, #tpu.memory_space<vmem>>, vector<96x128xf32>
    %c0_3 = arith.constant 0 : index
    %c0_4 = arith.constant 0 : index
    %10 = vector.load %arg2[%c0_3, %c0_4] : memref<96x128xf32, #tpu.memory_space<vmem>>, vector<96x128xf32>
    %11 = arith.subf %9, %10 : vector<96x128xf32>
    %cst = arith.constant 0.000000e+00 : f32
    %12 = vector.broadcast %cst : f32 to vector<96x128xf32>
    %13 = arith.select %8, %11, %12 : vector<96x128xi1>, vector<96x128xf32>
    %c0_5 = arith.constant 0 : index
    %c0_6 = arith.constant 0 : index
    %14 = vector.load %arg4[%c0_5, %c0_6] : memref<96x128xf32, #tpu.memory_space<vmem>>, vector<96x128xf32>
    %15 = arith.mulf %13, %13 : vector<96x128xf32>
    %16 = arith.addf %14, %15 : vector<96x128xf32>
    %c0_7 = arith.constant 0 : index
    %c0_8 = arith.constant 0 : index
    %17 = vector.load %arg4[%c0_7, %c0_8] : memref<96x128xf32, #tpu.memory_space<vmem>>, vector<96x128xf32>
    tpu.vector_store %arg4[%c0_7, %c0_8], %16 {strides = array<i32>} : memref<96x128xf32, #tpu.memory_space<vmem>>, vector<96x128xf32>,
    %c0_i32_9 = arith.constant 0 : i32
    %18 = arith.cmpi eq, %arg0, %c0_i32_9 : i32
    %19 = arith.extui %18 : i1 to i32
    %c0_i32_10 = arith.constant 0 : i32
    %20 = arith.cmpi ne, %19, %c0_i32_10 : i32
    scf.if %20 {
      %c0_11 = arith.constant 0 : index
      %c0_12 = arith.constant 0 : index
      %21 = vector.load %arg4[%c0_11, %c0_12] : memref<96x128xf32, #tpu.memory_space<vmem>>, vector<96x128xf32>
      %22 = vector.shape_cast %21 : vector<96x128xf32> to vector<1x96x128xf32>
      %cst_13 = arith.constant dense<0.000000e+00> : vector<1xf32>
      %23 = vector.multi_reduction <add>, %22, %cst_13 [1, 2] : vector<1x96x128xf32> to vector<1xf32>
      %24 = vector.shape_cast %23 : vector<1xf32> to vector<1x1x1xf32>
      %25 = vector.extract %24[0, 0, 0] : f32 from vector<1x1x1xf32>
      %26 = vector.broadcast %25 : f32 to vector<1x1xf32>
      %c0_14 = arith.constant 0 : index
      %c0_15 = arith.constant 0 : index
      %27 = vector.load %arg3[%c0_14, %c0_15] : memref<1x1xf32, #tpu.memory_space<vmem>>, vector<1x1xf32>
      tpu.vector_store %arg3[%c0_14, %c0_15], %26 {strides = array<i32>} : memref<1x1xf32, #tpu.memory_space<vmem>>, vector<1x1xf32>,
    } else {
    }
    return
  }
  func.func @transform_0(%arg0: i32) -> (i32, i32) {
    %c0_i32 = arith.constant 0 : i32
    %c0_i32_0 = arith.constant 0 : i32
    return %arg0, %c0_i32 : i32, i32
  }
  func.func @transform_1(%arg0: i32) -> (i32, i32) {
    %c0_i32 = arith.constant 0 : i32
    %c0_i32_0 = arith.constant 0 : i32
    return %arg0, %c0_i32 : i32, i32
  }
  func.func @transform_2(%arg0: i32) -> (i32, i32) {
    %c0_i32 = arith.constant 0 : i32
    %c0_i32_0 = arith.constant 0 : i32
    %c0_i32_1 = arith.constant 0 : i32
    return %c0_i32, %c0_i32_0 : i32, i32
  }
}

</mosaic_0001>

<llo_original>
// kernel: tpu_custom_call.1
$region0: #{tpu_custom_call.1}
  #allocation0 [shape = 'u32[]', space=smem, size = 0x4, offset = 0x4, fixed_abs, tag = 'smem constant byte address 0x4 - core index']
  #allocation1 [shape = 'u32[144,128]{1,0:T(1,128)}', space=vmem, size = 0x12000, scoped, tag = 'internal scratch']
  #allocation2 [shape = 'f32[96,128]{1,0:T(8,128)}', space=vmem, size = 0xc000, scoped, tag = 'scratch operand']
  %s0 = inlined_call_operand.hbm [shape: f32[96,128], index: 0, kind: input, shape index: {}]
  %s1 = inlined_call_operand.hbm [shape: f32[96,128], index: 1, kind: input, shape index: {}]
  %s2 = inlined_call_operand.hbm [shape: f32[1,1], index: 2, kind: output, shape index: {}]
  %s3 = sld [smem:[#allocation0]]
  $region34: #{tpu_custom_call.1} parent=0
    _
  %s5 = ssub.s32 1, %s3
  %s6 = scalar_select 0, %s5, %s3
  $region1: #{tpu_custom_call.1} parent=0
    #allocation3 [shape = 'u8[49152]{0}', space=vmem, size = 0xc000, scoped, tag = 'input window, operand 0, single buffered']
    #allocation4 [shape = 's32[1]{0}', space=sflag, size = 0x4, scoped, tag = 'scoped memory for tpu_custom_call.1']
    #allocation5 [shape = 's32[1]{0}', space=sflag, size = 0x4, scoped, tag = 'scoped memory for tpu_custom_call.1']
    #allocation6 [shape = 'u8[49152]{0}', space=vmem, size = 0xc000, scoped, tag = 'input window, operand 1, single buffered']
    #allocation7 [shape = 's32[1]{0}', space=sflag, size = 0x4, scoped, tag = 'scoped memory for tpu_custom_call.1']
    #allocation8 [shape = 'u8[512]{0}', space=vmem, size = 0x400, scoped, tag = 'output window, operand 0, single buffered']
    %7 = vsyncpa [#allocation4], 0
    %8 = vsyncpa [#allocation7], 0
    %9 = vsyncpa [#allocation5], 0
    // Predicated region
    $region2: #{tpu_custom_call.1} parent=1 // pred_check
      _
    $region3: #{tpu_custom_call.1} parent=1 // pred_check_branch
      %11 = sbr.rel (0) target = $region5
    $region4: #{tpu_custom_call.1} parent=1 // pred_region
      %s13 = ssub.s32 1536, 1536
      %14 = vsyncadd [#allocation4], %s13
      %s15 = sshll.u32 [#allocation3], 4
      %s16 = int_to_ptr.vmem [resolvable:$true] %s15
      %21 = dma.hbm_to_vmem [thread:$0]  %s0, 1536, %s16, [#allocation4], 128, 128, 8
    $region5: #{tpu_custom_call.1} parent=1 // pred_fallthru
      _
    // Predicated region
    $region6: #{tpu_custom_call.1} parent=1 // pred_check
      _
    $region7: #{tpu_custom_call.1} parent=1 // pred_check_branch
      %23 = sbr.rel (0) target = $region9
    $region8: #{tpu_custom_call.1} parent=1 // pred_region
      %s25 = ssub.s32 1536, 1536
      %26 = vsyncadd [#allocation7], %s25
      %s27 = sshll.u32 [#allocation6], 4
      %s28 = int_to_ptr.vmem [resolvable:$true] %s27
      %33 = dma.hbm_to_vmem [thread:$0]  %s1, 1536, %s28, [#allocation7], 128, 128, 8
    $region9: #{tpu_custom_call.1} parent=1 // pred_fallthru
      _
    // Predicated region
    $region10: #{tpu_custom_call.1} parent=1 // pred_check
      _
    $region11: #{tpu_custom_call.1} parent=1 // pred_check_branch
      %35 = sbr.rel (0) target = $region13
    $region12: #{tpu_custom_call.1} parent=1 // pred_region
      %36 = dma.done [#allocation4], 1536
    $region13: #{tpu_custom_call.1} parent=1 // pred_fallthru
      _
    // Predicated region
    $region14: #{tpu_custom_call.1} parent=1 // pred_check
      _
    $region15: #{tpu_custom_call.1} parent=1 // pred_check_branch
      %38 = sbr.rel (0) target = $region17
    $region16: #{tpu_custom_call.1} parent=1 // pred_region
      %39 = dma.done [#allocation7], 1536
    $region17: #{tpu_custom_call.1} parent=1 // pred_fallthru
      _
    %p40 = scmp.eq.s32.totalorder 0, 0
    // Predicated region
    $region18: #{tpu_custom_call.1} parent=1 // pred_check
      %p41 = pneg %p40
    $region19: #{tpu_custom_call.1} parent=1 // pred_check_branch
      %43 = sbr.rel (%p41) target = $region21
    $region20: #{tpu_custom_call.1} parent=1 // pred_region
      %44 = vst [vmem:[#allocation2] sm:$0xff] 0.0
      %45 = vst [vmem:[#allocation2 + $0x8] sm:$0xff] 0.0
      %46 = vst [vmem:[#allocation2 + $0x10] sm:$0xff] 0.0
      %47 = vst [vmem:[#allocation2 + $0x18] sm:$0xff] 0.0
      %48 = vst [vmem:[#allocation2 + $0x20] sm:$0xff] 0.0
      %49 = vst [vmem:[#allocation2 + $0x28] sm:$0xff] 0.0
      %50 = vst [vmem:[#allocation2 + $0x30] sm:$0xff] 0.0
      %51 = vst [vmem:[#allocation2 + $0x38] sm:$0xff] 0.0
      %52 = vst [vmem:[#allocation2 + $0x40] sm:$0xff] 0.0
      %53 = vst [vmem:[#allocation2 + $0x48] sm:$0xff] 0.0
      %54 = vst [vmem:[#allocation2 + $0x50] sm:$0xff] 0.0
      %55 = vst [vmem:[#allocation2 + $0x58] sm:$0xff] 0.0
    $region21: #{tpu_custom_call.1} parent=1 // pred_fallthru
      _
    %s56 = smul.u32 0, 96
    %v57 = vlaneseq
    %v58 = vshrl.u32 %v57, 7
    %v59 = vadd.s32 %v58, 8
    %v60 = vadd.s32 %v58, 16
    %v61 = vadd.s32 %v58, 24
    %v62 = vadd.s32 %v58, 32
    %v63 = vadd.s32 %v58, 40
    %v64 = vadd.s32 %v58, 48
    %v65 = vadd.s32 %v58, 56
    %v66 = vadd.s32 %v58, 64
    %v67 = vadd.s32 %v58, 72
    %v68 = vadd.s32 %v58, 80
    %v69 = vadd.s32 %v58, 88
    %v70 = vstv %s56
    %v71 = vadd.s32 %v70, %v58
    %v72 = vadd.s32 %v70, %v59
    %v73 = vadd.s32 %v70, %v60
    %v74 = vadd.s32 %v70, %v61
    %v75 = vadd.s32 %v70, %v62
    %v76 = vadd.s32 %v70, %v63
    %v77 = vadd.s32 %v70, %v64
    %v78 = vadd.s32 %v70, %v65
    %v79 = vadd.s32 %v70, %v66
    %v80 = vadd.s32 %v70, %v67
    %v81 = vadd.s32 %v70, %v68
    %v82 = vadd.s32 %v70, %v69
    %vm83 = vcmp.lt.s32.totalorder %v71, 96
    %vm84 = vcmp.lt.s32.totalorder %v72, 96
    %vm85 = vcmp.lt.s32.totalorder %v73, 96
    %vm86 = vcmp.lt.s32.totalorder %v74, 96
    %vm87 = vcmp.lt.s32.totalorder %v75, 96
    %vm88 = vcmp.lt.s32.totalorder %v76, 96
    %vm89 = vcmp.lt.s32.totalorder %v77, 96
    %vm90 = vcmp.lt.s32.totalorder %v78, 96
    %vm91 = vcmp.lt.s32.totalorder %v79, 96
    %vm92 = vcmp.lt.s32.totalorder %v80, 96
    %vm93 = vcmp.lt.s32.totalorder %v81, 96
    %vm94 = vcmp.lt.s32.totalorder %v82, 96
    %v95 = vld [vmem:[#allocation3] sm:$0xff]
    %v96 = vld [vmem:[#allocation3 + $0x8] sm:$0xff]
    %v97 = vld [vmem:[#allocation3 + $0x10] sm:$0xff]
    %v98 = vld [vmem:[#allocation3 + $0x18] sm:$0xff]
    %v99 = vld [vmem:[#allocation3 + $0x20] sm:$0xff]
    %v100 = vld [vmem:[#allocation3 + $0x28] sm:$0xff]
    %v101 = vld [vmem:[#allocation3 + $0x30] sm:$0xff]
    %v102 = vld [vmem:[#allocation3 + $0x38] sm:$0xff]
    %v103 = vld [vmem:[#allocation3 + $0x40] sm:$0xff]
    %v104 = vld [vmem:[#allocation3 + $0x48] sm:$0xff]
    %v105 = vld [vmem:[#allocation3 + $0x50] sm:$0xff]
    %v106 = vld [vmem:[#allocation3 + $0x58] sm:$0xff]
    %v107 = vld [vmem:[#allocation6] sm:$0xff]
    %v108 = vld [vmem:[#allocation6 + $0x8] sm:$0xff]
    %v109 = vld [vmem:[#allocation6 + $0x10] sm:$0xff]
    %v110 = vld [vmem:[#allocation6 + $0x18] sm:$0xff]
    %v111 = vld [vmem:[#allocation6 + $0x20] sm:$0xff]
    %v112 = vld [vmem:[#allocation6 + $0x28] sm:$0xff]
    %v113 = vld [vmem:[#allocation6 + $0x30] sm:$0xff]
    %v114 = vld [vmem:[#allocation6 + $0x38] sm:$0xff]
    %v115 = vld [vmem:[#allocation6 + $0x40] sm:$0xff]
    %v116 = vld [vmem:[#allocation6 + $0x48] sm:$0xff]
    %v117 = vld [vmem:[#allocation6 + $0x50] sm:$0xff]
    %v118 = vld [vmem:[#allocation6 + $0x58] sm:$0xff]
    %v119 = vsub.f32 %v95, %v107
    %v120 = vsub.f32 %v96, %v108
    %v121 = vsub.f32 %v97, %v109
    %v122 = vsub.f32 %v98, %v110
    %v123 = vsub.f32 %v99, %v111
    %v124 = vsub.f32 %v100, %v112
    %v125 = vsub.f32 %v101, %v113
    %v126 = vsub.f32 %v102, %v114
    %v127 = vsub.f32 %v103, %v115
    %v128 = vsub.f32 %v104, %v116
    %v129 = vsub.f32 %v105, %v117
    %v130 = vsub.f32 %v106, %v118
    %v131 = vsel %vm83, %v119, 0.0
    %v132 = vsel %vm84, %v120, 0.0
    %v133 = vsel %vm85, %v121, 0.0
    %v134 = vsel %vm86, %v122, 0.0
    %v135 = vsel %vm87, %v123, 0.0
    %v136 = vsel %vm88, %v124, 0.0
    %v137 = vsel %vm89, %v125, 0.0
    %v138 = vsel %vm90, %v126, 0.0
    %v139 = vsel %vm91, %v127, 0.0
    %v140 = vsel %vm92, %v128, 0.0
    %v141 = vsel %vm93, %v129, 0.0
    %v142 = vsel %vm94, %v130, 0.0
    %v143 = vld [vmem:[#allocation2] sm:$0xff]
    %v144 = vld [vmem:[#allocation2 + $0x8] sm:$0xff]
    %v145 = vld [vmem:[#allocation2 + $0x10] sm:$0xff]
    %v146 = vld [vmem:[#allocation2 + $0x18] sm:$0xff]
    %v147 = vld [vmem:[#allocation2 + $0x20] sm:$0xff]
    %v148 = vld [vmem:[#allocation2 + $0x28] sm:$0xff]
    %v149 = vld [vmem:[#allocation2 + $0x30] sm:$0xff]
    %v150 = vld [vmem:[#allocation2 + $0x38] sm:$0xff]
    %v151 = vld [vmem:[#allocation2 + $0x40] sm:$0xff]
    %v152 = vld [vmem:[#allocation2 + $0x48] sm:$0xff]
    %v153 = vld [vmem:[#allocation2 + $0x50] sm:$0xff]
    %v154 = vld [vmem:[#allocation2 + $0x58] sm:$0xff]
    %v155 = vmul.f32 %v131, %v131
    %v156 = vmul.f32 %v132, %v132
    %v157 = vmul.f32 %v133, %v133
    %v158 = vmul.f32 %v134, %v134
    %v159 = vmul.f32 %v135, %v135
    %v160 = vmul.f32 %v136, %v136
    %v161 = vmul.f32 %v137, %v137
    %v162 = vmul.f32 %v138, %v138
    %v163 = vmul.f32 %v139, %v139
    %v164 = vmul.f32 %v140, %v140
    %v165 = vmul.f32 %v141, %v141
    %v166 = vmul.f32 %v142, %v142
    %v167 = vadd.f32 %v143, %v155
    %v168 = vadd.f32 %v144, %v156
    %v169 = vadd.f32 %v145, %v157
    %v170 = vadd.f32 %v146, %v158
    %v171 = vadd.f32 %v147, %v159
    %v172 = vadd.f32 %v148, %v160
    %v173 = vadd.f32 %v149, %v161
    %v174 = vadd.f32 %v150, %v162
    %v175 = vadd.f32 %v151, %v163
    %v176 = vadd.f32 %v152, %v164
    %v177 = vadd.f32 %v153, %v165
    %v178 = vadd.f32 %v154, %v166
    %179 = vst [vmem:[#allocation2] sm:$0xff] %v167
    %180 = vst [vmem:[#allocation2 + $0x8] sm:$0xff] %v168
    %181 = vst [vmem:[#allocation2 + $0x10] sm:$0xff] %v169
    %182 = vst [vmem:[#allocation2 + $0x18] sm:$0xff] %v170
    %183 = vst [vmem:[#allocation2 + $0x20] sm:$0xff] %v171
    %184 = vst [vmem:[#allocation2 + $0x28] sm:$0xff] %v172
    %185 = vst [vmem:[#allocation2 + $0x30] sm:$0xff] %v173
    %186 = vst [vmem:[#allocation2 + $0x38] sm:$0xff] %v174
    %187 = vst [vmem:[#allocation2 + $0x40] sm:$0xff] %v175
    %188 = vst [vmem:[#allocation2 + $0x48] sm:$0xff] %v176
    %189 = vst [vmem:[#allocation2 + $0x50] sm:$0xff] %v177
    %190 = vst [vmem:[#allocation2 + $0x58] sm:$0xff] %v178
    // Predicated region
    $region22: #{tpu_custom_call.1} parent=1 // pred_check
      %p191 = pneg %p40
    $region23: #{tpu_custom_call.1} parent=1 // pred_check_branch
      %193 = sbr.rel (%p191) target = $region25
    $region24: #{tpu_custom_call.1} parent=1 // pred_region
      %v194 = vld [vmem:[#allocation2] sm:$0xff]
      %v195 = vld [vmem:[#allocation2 + $0x8] sm:$0xff]
      %v196 = vld [vmem:[#allocation2 + $0x10] sm:$0xff]
      %v197 = vld [vmem:[#allocation2 + $0x18] sm:$0xff]
      %v198 = vld [vmem:[#allocation2 + $0x20] sm:$0xff]
      %v199 = vld [vmem:[#allocation2 + $0x28] sm:$0xff]
      %v200 = vld [vmem:[#allocation2 + $0x30] sm:$0xff]
      %v201 = vld [vmem:[#allocation2 + $0x38] sm:$0xff]
      %v202 = vld [vmem:[#allocation2 + $0x40] sm:$0xff]
      %v203 = vld [vmem:[#allocation2 + $0x48] sm:$0xff]
      %v204 = vld [vmem:[#allocation2 + $0x50] sm:$0xff]
      %v205 = vld [vmem:[#allocation2 + $0x58] sm:$0xff]
      %v206 = vadd.f32 %v194, %v195
      %v207 = vadd.f32 %v206, %v196
      %v208 = vadd.f32 %v207, %v197
      %v209 = vadd.f32 %v208, %v198
      %v210 = vadd.f32 %v209, %v199
      %v211 = vadd.f32 %v210, %v200
      %v212 = vadd.f32 %v211, %v201
      %v213 = vadd.f32 %v212, %v202
      %v214 = vadd.f32 %v213, %v203
      %v215 = vadd.f32 %v214, %v204
      %v216 = vadd.f32 %v215, %v205
      %217 = vadd.xlane.f32.xlu0 %v216
      %v218 = vpop.xlane.xlu0 %217
      %v219 = vrot.slane %v218, 4
      %v220 = vadd.f32 %v218, %v219
      %v221 = vrot.slane %v220, 2
      %v222 = vadd.f32 %v220, %v221
      %v223 = vrot.slane %v222, 1
      %v224 = vadd.f32 %v222, %v223
      %s225 = vtos %v224
      %v226 = vstv %s225
      %vm227 = vcmask 0
      %228 = vst.msk [vmem:[#allocation8] sm:$0x1] %vm227, %v226
    $region25: #{tpu_custom_call.1} parent=1 // pred_fallthru
      _
    // Predicated region
    $region26: #{tpu_custom_call.1} parent=1 // pred_check
      _
    $region27: #{tpu_custom_call.1} parent=1 // pred_check_branch
      %230 = sbr.rel (0) target = $region29
    $region28: #{tpu_custom_call.1} parent=1 // pred_region
      %s232 = ssub.s32 16, 16
      %233 = vsyncadd [#allocation5], %s232
      %s235 = sshll.u32 [#allocation8], 4
      %s236 = int_to_ptr.vmem [resolvable:$true] %s235
      %238 = dma.vmem_to_hbm [thread:$0]  %s236, 16, %s2, [#allocation5]
    $region29: #{tpu_custom_call.1} parent=1 // pred_fallthru
      _
    // Predicated region
    $region30: #{tpu_custom_call.1} parent=1 // pred_check
      _
    $region31: #{tpu_custom_call.1} parent=1 // pred_check_branch
      %240 = sbr.rel (0) target = $region33
    $region32: #{tpu_custom_call.1} parent=1 // pred_region
      %241 = dma.done [#allocation5], 16
    $region33: #{tpu_custom_call.1} parent=1 // pred_fallthru
      _
    %242 = vsyncpa [#allocation4], 1
    %243 = vsyncpa [#allocation7], 1
    %244 = vsyncpa [#allocation5], 1

</llo_original>
